<compile_context>
chip_gen: v7x
topology: tpu7x:2x2x1
jax: 0.10.0
libtpu: 0.0.40
codegen_flags: <defaults>
</compile_context>

<pallas_src>
import jax
import jax.numpy as jnp
from jax.experimental import pallas as pl
from jax.experimental.pallas import tpu as pltpu


def _make_kernel(TS, D, chunk):
    # Static per-chunk (row offset, row count) schedule within one sequence tile.
    chunks = []
    off = 0
    while off < TS:
        n = min(chunk, TS - off)
        chunks.append((off, n))
        off += n
    n_chunks = len(chunks)

    def kernel(tok_ids_ref,       # SMEM (B, S) int32   (scalar prefetch)
               onehot_ref,        # VMEM (1, TS, 8) f32 (segment one-hot)
               seg_tab_ref,       # VMEM (8, D) f32     (segment table, zero-padded to 8 rows)
               pos_tab_ref,       # VMEM (TS, D)        (sinusoidal positional table tile)
               tok_tab_hbm,       # HBM/ANY (V, D)      (token table; manual DMA gather)
               out_ref,           # VMEM (1, TS, D)
               gather_buf,        # VMEM (TS, D) scratch (gathered token rows)
               sem):              # DMA semaphores (2,)
        b = pl.program_id(0)
        s = pl.program_id(1)
        seq0 = pl.multiple_of(s * TS, TS)          # first token of this tile

        def issue(ci, slot):
            base, nrows = chunks[ci]
            # Read all SMEM token ids first (keeps the scalar slot ahead of any sem wait),
            # then issue nrows row-gather DMAs that all signal sem[slot].
            tids = [tok_ids_ref[b, seq0 + base + r] for r in range(nrows)]
            for r in range(nrows):
                pltpu.make_async_copy(tok_tab_hbm.at[tids[r]],
                                      gather_buf.at[base + r],
                                      sem.at[slot]).start()

        def wait(ci, slot):
            base, nrows = chunks[ci]
            # One aggregated wait per chunk: DMA semaphores count bytes, and this descriptor's
            # byte size equals the sum of the nrows row copies that signalled sem[slot].
            pltpu.make_async_copy(tok_tab_hbm.at[pl.ds(0, nrows)],
                                  gather_buf.at[pl.ds(base, nrows)],
                                  sem.at[slot]).wait()

        # Keep two chunks (up to 2*chunk row DMAs) in flight.
        issue(0, 0)
        for ci in range(n_chunks):                 # static unroll (n_chunks is small)
            slot = ci & 1
            if ci + 1 < n_chunks:
                issue(ci + 1, 1 - slot)
            wait(ci, slot)

        # Vectorized epilogue: segment embedding via a tiny one-hot matmul on the idle MXU,
        # f32 accumulation, one lane-dense (TS, D) store.
        seg_emb = jnp.dot(onehot_ref[0], seg_tab_ref[...],
                          preferred_element_type=jnp.float32)                 # (TS, D) f32
        acc = (gather_buf[...].astype(jnp.float32)
               + pos_tab_ref[...].astype(jnp.float32)
               + seg_emb)
        out_ref[0] = acc.astype(out_ref.dtype)
        # TODO(synk): nn.Dropout is identity in eval mode; training-mode dropout
        # (pltpu.prng_seed + prng_random_bits mask) is not emitted here.

    return kernel


def bert_embedding(tok_ids, seg_ids, tok_table, seg_table, pos_table):
    """out[b, t] = tok_table[tok_ids[b, t]] + pos_table[t] + seg_table[seg_ids[b, t]]"""
    B, S = tok_ids.shape
    V, D = tok_table.shape
    out_dtype = tok_table.dtype

    # Sequence tiling (TS divides S): keeps per-step VMEM small and lets the BlockSpec pipeline
    # overlap output writeback / pos-table fetch of neighbouring tiles with the current tile.
    if S % 256 == 0 and S > 256:
        TS = 256
    elif S % 128 == 0 and S > 128:
        TS = 128
    else:
        TS = S
    n_tiles = S // TS
    chunk = min(64, TS)                            # rows per in-flight DMA group

    kernel = _make_kernel(TS, D, chunk)

    # Segment embedding as a one-hot matmul: pad to 8 classes so the contracting dim is
    # sublane-aligned; rows 3..7 of the padded table are zero so out-of-range ids map to 0.
    onehot = jax.nn.one_hot(seg_ids.astype(jnp.int32), 8, dtype=jnp.float32)   # (B, S, 8)
    seg_table_p = jnp.zeros((8, D), jnp.float32).at[:3, :].set(seg_table.astype(jnp.float32))

    itemsize = jnp.dtype(out_dtype).itemsize
    vmem_need = (TS * D * itemsize                     # gather scratch
                 + 2 * TS * D * itemsize               # out double buffer
                 + 2 * TS * D * jnp.dtype(pos_table.dtype).itemsize
                 + 2 * TS * 8 * 4                      # one-hot double buffer
                 + 2 * 8 * D * 4)                      # segment table double buffer
    vmem_limit = int(min(max(2 * vmem_need + (4 << 20), 32 << 20), 100 << 20))

    return pl.pallas_call(
        kernel,
        out_shape=jax.ShapeDtypeStruct((B, S, D), out_dtype),
        grid_spec=pltpu.PrefetchScalarGridSpec(
            num_scalar_prefetch=1,                     # tok_ids -> SMEM (drives the DMA gather)
            grid=(B, n_tiles),
            in_specs=[
                pl.BlockSpec((1, TS, 8), lambda b, s, tok: (b, s, 0)),   # segment one-hot
                pl.BlockSpec((8, D),     lambda b, s, tok: (0, 0)),      # padded segment table
                pl.BlockSpec((TS, D),    lambda b, s, tok: (s, 0)),      # positional table tile
                pl.BlockSpec(memory_space=pl.ANY),                       # token table stays in HBM
            ],
            out_specs=pl.BlockSpec((1, TS, D), lambda b, s, tok: (b, s, 0)),
            scratch_shapes=[
                pltpu.VMEM((TS, D), out_dtype),                          # gathered token rows
                pltpu.SemaphoreType.DMA((2,)),                           # one sem per in-flight chunk
            ],
        ),
        compiler_params=pltpu.CompilerParams(
            dimension_semantics=("parallel", "parallel"),
            vmem_limit_bytes=vmem_limit,
        ),
    )(tok_ids.astype(jnp.int32), onehot, seg_table_p, pos_table, tok_table)


def make_sinusoidal_pos_table(max_len, d_model):
    pos = jnp.arange(max_len, dtype=jnp.float32)[:, None]                 # (L, 1)
    _2i = jnp.arange(0, d_model, 2, dtype=jnp.float32)                    # (D/2,)
    angle = pos / jnp.power(10000.0, _2i / d_model)                       # (L, D/2)
    tab = jnp.zeros((max_len, d_model), dtype=jnp.float32)
    tab = tab.at[:, 0::2].set(jnp.sin(angle))
    tab = tab.at[:, 1::2].set(jnp.cos(angle))
    return tab


if __name__ == "__main__":
    # Small, deterministic configuration.
    n_vocab, d_embed = 32, 128
    B, S = 2, 8

    key = jax.random.PRNGKey(0)
    k_tok, k_seg, k_ids, k_segids = jax.random.split(key, 4)

    # nn.Embedding init ~ N(0,1); padding_idx=0 row is zeroed.
    tok_table = jax.random.normal(k_tok, (n_vocab, d_embed), dtype=jnp.float32)
    tok_table = tok_table.at[0].set(0.0)
    seg_table = jax.random.normal(k_seg, (3, d_embed), dtype=jnp.float32)
    seg_table = seg_table.at[0].set(0.0)

    pos_table_full = make_sinusoidal_pos_table(512, d_embed)
    pos_table = pos_table_full[:S]                                        # pos_embed[:, :x.size(1)]

    tok_ids = jax.random.randint(k_ids, (B, S), 0, n_vocab, dtype=jnp.int32)
    seg_ids = jax.random.randint(k_segids, (B, S), 0, 3, dtype=jnp.int32)

    # --- float32 path (matches the PyTorch module's float semantics) ---
    out = bert_embedding(tok_ids, seg_ids, tok_table, seg_table, pos_table)
    out = jax.block_until_ready(out)
    ref = tok_table[tok_ids] + pos_table[None, :, :] + seg_table[seg_ids]
    assert out.shape == (B, S, d_embed)
    assert jnp.allclose(out, ref, atol=1e-4, rtol=1e-4), "f32 mismatch vs reference"

    # --- bf16 deployment path (halves HBM gather + store traffic; adds still in f32) ---
    out_bf = bert_embedding(tok_ids, seg_ids, tok_table.astype(jnp.bfloat16),
                            seg_table, pos_table)
    out_bf = jax.block_until_ready(out_bf)
    assert out_bf.dtype == jnp.bfloat16
    ref_bf = (tok_table.astype(jnp.bfloat16).astype(jnp.float32)[tok_ids]
              + pos_table[None, :, :] + seg_table[seg_ids])
    assert jnp.allclose(out_bf.astype(jnp.float32), ref_bf, atol=5e-2, rtol=5e-2), \
        "bf16 mismatch vs reference"

    print("KERNEL_OK")
</pallas_src>

<mosaic_0001>
module attributes {stable_mosaic.version = 11 : i64} {
  func.func @kernel(%arg0: i32, %arg1: i32, %arg2: memref<2x8xi32, #tpu.memory_space<smem>>, %arg3: memref<1x8x8xf32, #tpu.memory_space<vmem>>, %arg4: memref<8x128xf32, #tpu.memory_space<vmem>>, %arg5: memref<8x128xf32, #tpu.memory_space<vmem>>, %arg6: memref<32x128xf32, #tpu.memory_space<any>>, %arg7: memref<1x8x128xf32, #tpu.memory_space<vmem>>, %arg8: memref<8x128xf32, #tpu.memory_space<vmem>>, %arg9: memref<2x!tpu.dma_semaphore, #tpu.memory_space<semaphore_mem>>) attributes {dimension_semantics = [#tpu.dimension_semantics<parallel>, #tpu.dimension_semantics<parallel>], iteration_bounds = array<i64: 2, 1>, scalar_prefetch = 1 : i64, scratch_operands = 2 : i64, tpu.core_type = #tpu.core_type<tc>, window_params = [{transform_indices = @transform_0, window_bounds = array<i64: 1, 8, 8>}, {pipeline_mode = #tpu.pipeline_mode<synchronous>, transform_indices = @transform_1, window_bounds = array<i64: 8, 128>}, {transform_indices = @transform_2, window_bounds = array<i64: 8, 128>}, {}, {transform_indices = @transform_4, window_bounds = array<i64: 1, 8, 128>}]} {
    %c8_i32 = arith.constant 8 : i32
    %0 = arith.muli %arg1, %c8_i32 : i32
    %1 = tpu.assume_multiple %0, 8 : i32
    %c0_i32 = arith.constant 0 : i32
    %2 = arith.addi %1, %c0_i32 : i32
    %c0_i32_0 = arith.constant 0 : i32
    %3 = arith.addi %2, %c0_i32_0 : i32
    %4 = arith.index_cast %arg0 : i32 to index
    %5 = arith.index_cast %3 : i32 to index
    %6 = memref.load %arg2[%4, %5] : memref<2x8xi32, #tpu.memory_space<smem>>
    %c0_i32_1 = arith.constant 0 : i32
    %7 = arith.addi %1, %c0_i32_1 : i32
    %c1_i32 = arith.constant 1 : i32
    %8 = arith.addi %7, %c1_i32 : i32
    %9 = arith.index_cast %arg0 : i32 to index
    %10 = arith.index_cast %8 : i32 to index
    %11 = memref.load %arg2[%9, %10] : memref<2x8xi32, #tpu.memory_space<smem>>
    %c0_i32_2 = arith.constant 0 : i32
    %12 = arith.addi %1, %c0_i32_2 : i32
    %c2_i32 = arith.constant 2 : i32
    %13 = arith.addi %12, %c2_i32 : i32
    %14 = arith.index_cast %arg0 : i32 to index
    %15 = arith.index_cast %13 : i32 to index
    %16 = memref.load %arg2[%14, %15] : memref<2x8xi32, #tpu.memory_space<smem>>
    %c0_i32_3 = arith.constant 0 : i32
    %17 = arith.addi %1, %c0_i32_3 : i32
    %c3_i32 = arith.constant 3 : i32
    %18 = arith.addi %17, %c3_i32 : i32
    %19 = arith.index_cast %arg0 : i32 to index
    %20 = arith.index_cast %18 : i32 to index
    %21 = memref.load %arg2[%19, %20] : memref<2x8xi32, #tpu.memory_space<smem>>
    %c0_i32_4 = arith.constant 0 : i32
    %22 = arith.addi %1, %c0_i32_4 : i32
    %c4_i32 = arith.constant 4 : i32
    %23 = arith.addi %22, %c4_i32 : i32
    %24 = arith.index_cast %arg0 : i32 to index
    %25 = arith.index_cast %23 : i32 to index
    %26 = memref.load %arg2[%24, %25] : memref<2x8xi32, #tpu.memory_space<smem>>
    %c0_i32_5 = arith.constant 0 : i32
    %27 = arith.addi %1, %c0_i32_5 : i32
    %c5_i32 = arith.constant 5 : i32
    %28 = arith.addi %27, %c5_i32 : i32
    %29 = arith.index_cast %arg0 : i32 to index
    %30 = arith.index_cast %28 : i32 to index
    %31 = memref.load %arg2[%29, %30] : memref<2x8xi32, #tpu.memory_space<smem>>
    %c0_i32_6 = arith.constant 0 : i32
    %32 = arith.addi %1, %c0_i32_6 : i32
    %c6_i32 = arith.constant 6 : i32
    %33 = arith.addi %32, %c6_i32 : i32
    %34 = arith.index_cast %arg0 : i32 to index
    %35 = arith.index_cast %33 : i32 to index
    %36 = memref.load %arg2[%34, %35] : memref<2x8xi32, #tpu.memory_space<smem>>
    %c0_i32_7 = arith.constant 0 : i32
    %37 = arith.addi %1, %c0_i32_7 : i32
    %c7_i32 = arith.constant 7 : i32
    %38 = arith.addi %37, %c7_i32 : i32
    %39 = arith.index_cast %arg0 : i32 to index
    %40 = arith.index_cast %38 : i32 to index
    %41 = memref.load %arg2[%39, %40] : memref<2x8xi32, #tpu.memory_space<smem>>
    %c0_i32_8 = arith.constant 0 : i32
    %c0_i32_9 = arith.constant 0 : i32
    %c0_i32_10 = arith.constant 0 : i32
    %42 = tpu.memref_slice %arg6[%6, %c0_i32_10] : memref<32x128xf32, #tpu.memory_space<any>> -> memref<1x128xf32, #tpu.memory_space<any>>
    %43 = tpu.memref_squeeze %42 : memref<1x128xf32, #tpu.memory_space<any>> -> memref<128xf32, #tpu.memory_space<any>>
    %c0_i32_11 = arith.constant 0 : i32
    %44 = tpu.memref_slice %arg8[%c0_i32_8, %c0_i32_11] : memref<8x128xf32, #tpu.memory_space<vmem>> -> memref<1x128xf32, #tpu.memory_space<vmem>>
    %45 = tpu.memref_squeeze %44 : memref<1x128xf32, #tpu.memory_space<vmem>> -> memref<128xf32, #tpu.memory_space<vmem>>
    %46 = tpu.memref_slice %arg9[%c0_i32_9] : memref<2x!tpu.dma_semaphore, #tpu.memory_space<semaphore_mem>> -> memref<1x!tpu.dma_semaphore, #tpu.memory_space<semaphore_mem>>
    %47 = tpu.memref_squeeze %46 : memref<1x!tpu.dma_semaphore, #tpu.memory_space<semaphore_mem>> -> memref<!tpu.dma_semaphore, #tpu.memory_space<semaphore_mem>>
    tpu.enqueue_dma source(%43 : memref<128xf32, #tpu.memory_space<any>>) target(%45 : memref<128xf32, #tpu.memory_space<vmem>>) target_semaphore(%47 : memref<!tpu.dma_semaphore, #tpu.memory_space<semaphore_mem>>)
    %c1_i32_12 = arith.constant 1 : i32
    %c0_i32_13 = arith.constant 0 : i32
    %c0_i32_14 = arith.constant 0 : i32
    %48 = tpu.memref_slice %arg6[%11, %c0_i32_14] : memref<32x128xf32, #tpu.memory_space<any>> -> memref<1x128xf32, #tpu.memory_space<any>>
    %49 = tpu.memref_squeeze %48 : memref<1x128xf32, #tpu.memory_space<any>> -> memref<128xf32, #tpu.memory_space<any>>
    %c0_i32_15 = arith.constant 0 : i32
    %50 = tpu.memref_slice %arg8[%c1_i32_12, %c0_i32_15] : memref<8x128xf32, #tpu.memory_space<vmem>> -> memref<1x128xf32, #tpu.memory_space<vmem>>
    %51 = tpu.memref_squeeze %50 : memref<1x128xf32, #tpu.memory_space<vmem>> -> memref<128xf32, #tpu.memory_space<vmem>>
    %52 = tpu.memref_slice %arg9[%c0_i32_13] : memref<2x!tpu.dma_semaphore, #tpu.memory_space<semaphore_mem>> -> memref<1x!tpu.dma_semaphore, #tpu.memory_space<semaphore_mem>>
    %53 = tpu.memref_squeeze %52 : memref<1x!tpu.dma_semaphore, #tpu.memory_space<semaphore_mem>> -> memref<!tpu.dma_semaphore, #tpu.memory_space<semaphore_mem>>
    tpu.enqueue_dma source(%49 : memref<128xf32, #tpu.memory_space<any>>) target(%51 : memref<128xf32, #tpu.memory_space<vmem>>) target_semaphore(%53 : memref<!tpu.dma_semaphore, #tpu.memory_space<semaphore_mem>>)
    %c2_i32_16 = arith.constant 2 : i32
    %c0_i32_17 = arith.constant 0 : i32
    %c0_i32_18 = arith.constant 0 : i32
    %54 = tpu.memref_slice %arg6[%16, %c0_i32_18] : memref<32x128xf32, #tpu.memory_space<any>> -> memref<1x128xf32, #tpu.memory_space<any>>
    %55 = tpu.memref_squeeze %54 : memref<1x128xf32, #tpu.memory_space<any>> -> memref<128xf32, #tpu.memory_space<any>>
    %c0_i32_19 = arith.constant 0 : i32
    %56 = tpu.memref_slice %arg8[%c2_i32_16, %c0_i32_19] : memref<8x128xf32, #tpu.memory_space<vmem>> -> memref<1x128xf32, #tpu.memory_space<vmem>>
    %57 = tpu.memref_squeeze %56 : memref<1x128xf32, #tpu.memory_space<vmem>> -> memref<128xf32, #tpu.memory_space<vmem>>
    %58 = tpu.memref_slice %arg9[%c0_i32_17] : memref<2x!tpu.dma_semaphore, #tpu.memory_space<semaphore_mem>> -> memref<1x!tpu.dma_semaphore, #tpu.memory_space<semaphore_mem>>
    %59 = tpu.memref_squeeze %58 : memref<1x!tpu.dma_semaphore, #tpu.memory_space<semaphore_mem>> -> memref<!tpu.dma_semaphore, #tpu.memory_space<semaphore_mem>>
    tpu.enqueue_dma source(%55 : memref<128xf32, #tpu.memory_space<any>>) target(%57 : memref<128xf32, #tpu.memory_space<vmem>>) target_semaphore(%59 : memref<!tpu.dma_semaphore, #tpu.memory_space<semaphore_mem>>)
    %c3_i32_20 = arith.constant 3 : i32
    %c0_i32_21 = arith.constant 0 : i32
    %c0_i32_22 = arith.constant 0 : i32
    %60 = tpu.memref_slice %arg6[%21, %c0_i32_22] : memref<32x128xf32, #tpu.memory_space<any>> -> memref<1x128xf32, #tpu.memory_space<any>>
    %61 = tpu.memref_squeeze %60 : memref<1x128xf32, #tpu.memory_space<any>> -> memref<128xf32, #tpu.memory_space<any>>
    %c0_i32_23 = arith.constant 0 : i32
    %62 = tpu.memref_slice %arg8[%c3_i32_20, %c0_i32_23] : memref<8x128xf32, #tpu.memory_space<vmem>> -> memref<1x128xf32, #tpu.memory_space<vmem>>
    %63 = tpu.memref_squeeze %62 : memref<1x128xf32, #tpu.memory_space<vmem>> -> memref<128xf32, #tpu.memory_space<vmem>>
    %64 = tpu.memref_slice %arg9[%c0_i32_21] : memref<2x!tpu.dma_semaphore, #tpu.memory_space<semaphore_mem>> -> memref<1x!tpu.dma_semaphore, #tpu.memory_space<semaphore_mem>>
    %65 = tpu.memref_squeeze %64 : memref<1x!tpu.dma_semaphore, #tpu.memory_space<semaphore_mem>> -> memref<!tpu.dma_semaphore, #tpu.memory_space<semaphore_mem>>
    tpu.enqueue_dma source(%61 : memref<128xf32, #tpu.memory_space<any>>) target(%63 : memref<128xf32, #tpu.memory_space<vmem>>) target_semaphore(%65 : memref<!tpu.dma_semaphore, #tpu.memory_space<semaphore_mem>>)
    %c4_i32_24 = arith.constant 4 : i32
    %c0_i32_25 = arith.constant 0 : i32
    %c0_i32_26 = arith.constant 0 : i32
    %66 = tpu.memref_slice %arg6[%26, %c0_i32_26] : memref<32x128xf32, #tpu.memory_space<any>> -> memref<1x128xf32, #tpu.memory_space<any>>
    %67 = tpu.memref_squeeze %66 : memref<1x128xf32, #tpu.memory_space<any>> -> memref<128xf32, #tpu.memory_space<any>>
    %c0_i32_27 = arith.constant 0 : i32
    %68 = tpu.memref_slice %arg8[%c4_i32_24, %c0_i32_27] : memref<8x128xf32, #tpu.memory_space<vmem>> -> memref<1x128xf32, #tpu.memory_space<vmem>>
    %69 = tpu.memref_squeeze %68 : memref<1x128xf32, #tpu.memory_space<vmem>> -> memref<128xf32, #tpu.memory_space<vmem>>
    %70 = tpu.memref_slice %arg9[%c0_i32_25] : memref<2x!tpu.dma_semaphore, #tpu.memory_space<semaphore_mem>> -> memref<1x!tpu.dma_semaphore, #tpu.memory_space<semaphore_mem>>
    %71 = tpu.memref_squeeze %70 : memref<1x!tpu.dma_semaphore, #tpu.memory_space<semaphore_mem>> -> memref<!tpu.dma_semaphore, #tpu.memory_space<semaphore_mem>>
    tpu.enqueue_dma source(%67 : memref<128xf32, #tpu.memory_space<any>>) target(%69 : memref<128xf32, #tpu.memory_space<vmem>>) target_semaphore(%71 : memref<!tpu.dma_semaphore, #tpu.memory_space<semaphore_mem>>)
    %c5_i32_28 = arith.constant 5 : i32
    %c0_i32_29 = arith.constant 0 : i32
    %c0_i32_30 = arith.constant 0 : i32
    %72 = tpu.memref_slice %arg6[%31, %c0_i32_30] : memref<32x128xf32, #tpu.memory_space<any>> -> memref<1x128xf32, #tpu.memory_space<any>>
    %73 = tpu.memref_squeeze %72 : memref<1x128xf32, #tpu.memory_space<any>> -> memref<128xf32, #tpu.memory_space<any>>
    %c0_i32_31 = arith.constant 0 : i32
    %74 = tpu.memref_slice %arg8[%c5_i32_28, %c0_i32_31] : memref<8x128xf32, #tpu.memory_space<vmem>> -> memref<1x128xf32, #tpu.memory_space<vmem>>
    %75 = tpu.memref_squeeze %74 : memref<1x128xf32, #tpu.memory_space<vmem>> -> memref<128xf32, #tpu.memory_space<vmem>>
    %76 = tpu.memref_slice %arg9[%c0_i32_29] : memref<2x!tpu.dma_semaphore, #tpu.memory_space<semaphore_mem>> -> memref<1x!tpu.dma_semaphore, #tpu.memory_space<semaphore_mem>>
    %77 = tpu.memref_squeeze %76 : memref<1x!tpu.dma_semaphore, #tpu.memory_space<semaphore_mem>> -> memref<!tpu.dma_semaphore, #tpu.memory_space<semaphore_mem>>
    tpu.enqueue_dma source(%73 : memref<128xf32, #tpu.memory_space<any>>) target(%75 : memref<128xf32, #tpu.memory_space<vmem>>) target_semaphore(%77 : memref<!tpu.dma_semaphore, #tpu.memory_space<semaphore_mem>>)
    %c6_i32_32 = arith.constant 6 : i32
    %c0_i32_33 = arith.constant 0 : i32
    %c0_i32_34 = arith.constant 0 : i32
    %78 = tpu.memref_slice %arg6[%36, %c0_i32_34] : memref<32x128xf32, #tpu.memory_space<any>> -> memref<1x128xf32, #tpu.memory_space<any>>
    %79 = tpu.memref_squeeze %78 : memref<1x128xf32, #tpu.memory_space<any>> -> memref<128xf32, #tpu.memory_space<any>>
    %c0_i32_35 = arith.constant 0 : i32
    %80 = tpu.memref_slice %arg8[%c6_i32_32, %c0_i32_35] : memref<8x128xf32, #tpu.memory_space<vmem>> -> memref<1x128xf32, #tpu.memory_space<vmem>>
    %81 = tpu.memref_squeeze %80 : memref<1x128xf32, #tpu.memory_space<vmem>> -> memref<128xf32, #tpu.memory_space<vmem>>
    %82 = tpu.memref_slice %arg9[%c0_i32_33] : memref<2x!tpu.dma_semaphore, #tpu.memory_space<semaphore_mem>> -> memref<1x!tpu.dma_semaphore, #tpu.memory_space<semaphore_mem>>
    %83 = tpu.memref_squeeze %82 : memref<1x!tpu.dma_semaphore, #tpu.memory_space<semaphore_mem>> -> memref<!tpu.dma_semaphore, #tpu.memory_space<semaphore_mem>>
    tpu.enqueue_dma source(%79 : memref<128xf32, #tpu.memory_space<any>>) target(%81 : memref<128xf32, #tpu.memory_space<vmem>>) target_semaphore(%83 : memref<!tpu.dma_semaphore, #tpu.memory_space<semaphore_mem>>)
    %c7_i32_36 = arith.constant 7 : i32
    %c0_i32_37 = arith.constant 0 : i32
    %c0_i32_38 = arith.constant 0 : i32
    %84 = tpu.memref_slice %arg6[%41, %c0_i32_38] : memref<32x128xf32, #tpu.memory_space<any>> -> memref<1x128xf32, #tpu.memory_space<any>>
    %85 = tpu.memref_squeeze %84 : memref<1x128xf32, #tpu.memory_space<any>> -> memref<128xf32, #tpu.memory_space<any>>
    %c0_i32_39 = arith.constant 0 : i32
    %86 = tpu.memref_slice %arg8[%c7_i32_36, %c0_i32_39] : memref<8x128xf32, #tpu.memory_space<vmem>> -> memref<1x128xf32, #tpu.memory_space<vmem>>
    %87 = tpu.memref_squeeze %86 : memref<1x128xf32, #tpu.memory_space<vmem>> -> memref<128xf32, #tpu.memory_space<vmem>>
    %88 = tpu.memref_slice %arg9[%c0_i32_37] : memref<2x!tpu.dma_semaphore, #tpu.memory_space<semaphore_mem>> -> memref<1x!tpu.dma_semaphore, #tpu.memory_space<semaphore_mem>>
    %89 = tpu.memref_squeeze %88 : memref<1x!tpu.dma_semaphore, #tpu.memory_space<semaphore_mem>> -> memref<!tpu.dma_semaphore, #tpu.memory_space<semaphore_mem>>
    tpu.enqueue_dma source(%85 : memref<128xf32, #tpu.memory_space<any>>) target(%87 : memref<128xf32, #tpu.memory_space<vmem>>) target_semaphore(%89 : memref<!tpu.dma_semaphore, #tpu.memory_space<semaphore_mem>>)
    %c0_i32_40 = arith.constant 0 : i32
    %c0_i32_41 = arith.constant 0 : i32
    %c0_i32_42 = arith.constant 0 : i32
    %90 = tpu.memref_slice %arg6[%c0_i32_41, %c0_i32_42] : memref<32x128xf32, #tpu.memory_space<any>> -> memref<8x128xf32, #tpu.memory_space<any>>
    %c0_i32_43 = arith.constant 0 : i32
    %c0_i32_44 = arith.constant 0 : i32
    %91 = tpu.memref_slice %arg8[%c0_i32_43, %c0_i32_44] : memref<8x128xf32, #tpu.memory_space<vmem>> -> memref<8x128xf32, #tpu.memory_space<vmem>>
    %92 = tpu.memref_slice %arg9[%c0_i32_40] : memref<2x!tpu.dma_semaphore, #tpu.memory_space<semaphore_mem>> -> memref<1x!tpu.dma_semaphore, #tpu.memory_space<semaphore_mem>>
    %93 = tpu.memref_squeeze %92 : memref<1x!tpu.dma_semaphore, #tpu.memory_space<semaphore_mem>> -> memref<!tpu.dma_semaphore, #tpu.memory_space<semaphore_mem>>
    tpu.wait_dma2 semaphore(%93 : memref<!tpu.dma_semaphore, #tpu.memory_space<semaphore_mem>>) src(%90 : memref<8x128xf32, #tpu.memory_space<any>>) dst(%91 : memref<8x128xf32, #tpu.memory_space<vmem>>)
    %c0 = arith.constant 0 : index
    %c0_45 = arith.constant 0 : index
    %c0_46 = arith.constant 0 : index
    %94 = vector.load %arg3[%c0, %c0_45, %c0_46] : memref<1x8x8xf32, #tpu.memory_space<vmem>>, vector<1x8x8xf32>
    %95 = vector.shape_cast %94 : vector<1x8x8xf32> to vector<8x8xf32>
    %c0_47 = arith.constant 0 : index
    %c0_48 = arith.constant 0 : index
    %96 = vector.load %arg4[%c0_47, %c0_48] : memref<8x128xf32, #tpu.memory_space<vmem>>, vector<8x128xf32>
    %cst = arith.constant dense<0.000000e+00> : vector<8x128xf32>
    %97 = tpu.matmul %95, %96, %cst {dimension_numbers = #tpu.dot_dimension_numbers<[1], [0], [0], [1], [0, 0, 1, 1], [], []>} : vector<8x8xf32>, vector<8x128xf32>, vector<8x128xf32> -> vector<8x128xf32>
    %c0_49 = arith.constant 0 : index
    %c0_50 = arith.constant 0 : index
    %98 = vector.load %arg8[%c0_49, %c0_50] : memref<8x128xf32, #tpu.memory_space<vmem>>, vector<8x128xf32>
    %c0_51 = arith.constant 0 : index
    %c0_52 = arith.constant 0 : index
    %99 = vector.load %arg5[%c0_51, %c0_52] : memref<8x128xf32, #tpu.memory_space<vmem>>, vector<8x128xf32>
    %100 = arith.addf %98, %99 : vector<8x128xf32>
    %101 = arith.addf %100, %97 : vector<8x128xf32>
    %c0_53 = arith.constant 0 : index
    %c0_54 = arith.constant 0 : index
    %c0_55 = arith.constant 0 : index
    %102 = vector.load %arg7[%c0_53, %c0_54, %c0_55] : memref<1x8x128xf32, #tpu.memory_space<vmem>>, vector<1x8x128xf32>
    %103 = vector.shape_cast %102 : vector<1x8x128xf32> to vector<8x128xf32>
    %104 = vector.shape_cast %101 : vector<8x128xf32> to vector<1x8x128xf32>
    tpu.vector_store %arg7[%c0_53, %c0_54, %c0_55], %104 {strides = array<i32>} : memref<1x8x128xf32, #tpu.memory_space<vmem>>, vector<1x8x128xf32>,
    return
  }
  func.func @transform_0(%arg0: i32, %arg1: i32, %arg2: memref<2x8xi32, #tpu.memory_space<smem>>) -> (i32, i32, i32) {
    %c0_i32 = arith.constant 0 : i32
    %c0_i32_0 = arith.constant 0 : i32
    return %arg0, %arg1, %c0_i32 : i32, i32, i32
  }
  func.func @transform_1(%arg0: i32, %arg1: i32, %arg2: memref<2x8xi32, #tpu.memory_space<smem>>) -> (i32, i32) {
    %c0_i32 = arith.constant 0 : i32
    %c0_i32_0 = arith.constant 0 : i32
    %c0_i32_1 = arith.constant 0 : i32
    return %c0_i32, %c0_i32_0 : i32, i32
  }
  func.func @transform_2(%arg0: i32, %arg1: i32, %arg2: memref<2x8xi32, #tpu.memory_space<smem>>) -> (i32, i32) {
    %c0_i32 = arith.constant 0 : i32
    %c0_i32_0 = arith.constant 0 : i32
    return %arg1, %c0_i32 : i32, i32
  }
  func.func @transform_4(%arg0: i32, %arg1: i32, %arg2: memref<2x8xi32, #tpu.memory_space<smem>>) -> (i32, i32, i32) {
    %c0_i32 = arith.constant 0 : i32
    %c0_i32_0 = arith.constant 0 : i32
    return %arg0, %arg1, %c0_i32 : i32, i32, i32
  }
}

</mosaic_0001>

<llo_original>
// kernel: tpu_custom_call.1
$region0: #{tpu_custom_call.1}
  #allocation0 [shape = 'u32[]', space=smem, size = 0x4, offset = 0x4, fixed_abs, tag = 'smem constant byte address 0x4 - core index']
  #allocation1 [shape = 'u32[144,128]{1,0:T(1,128)}', space=vmem, size = 0x12000, scoped, tag = 'internal scratch']
  #allocation2 [shape = 'f32[8,128]{1,0:T(8,128)}', space=vmem, size = 0x1000, scoped, tag = 'scratch operand']
  #allocation3 [shape = 's32[2]{0}', space=sflag, size = 0x8, scoped, tag = 'scratch operand']
  #allocation4 [shape = 's32[1]{0}', space=sflag, size = 0x4, scoped, tag = 'scoped memory for tpu_custom_call.1']
  #allocation5 [shape = 'u8[1024]{0}', space=smem, size = 0x400, scoped, tag = 'prefetched SMEM operand 0']
  #allocation12 [shape = 's32[]', space=sflag, size = 0x4, offset = 0, fixed_abs, tag = 'sflag constant byte address 0x0 - dummy sync flag']
  #allocation13 [shape = 's32[]', space=sflag, size = 0x4, offset = 0, fixed_abs, tag = 'sflag constant byte address 0x0 - dummy sync flag']
  #allocation14 [shape = 'u32[]', space=smem, size = 0x4, offset = 0x44, fixed_abs, tag = 'smem constant byte address 0x44 - assertion arg 0']
  #allocation15 [shape = 'u32[]', space=smem, size = 0x4, offset = 0x48, fixed_abs, tag = 'smem constant byte address 0x48 - assertion arg 1']
  #allocation16 [shape = 's32[]', space=sflag, size = 0x4, offset = 0, fixed_abs, tag = 'sflag constant byte address 0x0 - dummy sync flag']
  #allocation17 [shape = 's32[]', space=sflag, size = 0x4, offset = 0, fixed_abs, tag = 'sflag constant byte address 0x0 - dummy sync flag']
  #allocation18 [shape = 's32[]', space=sflag, size = 0x4, offset = 0, fixed_abs, tag = 'sflag constant byte address 0x0 - dummy sync flag']
  #allocation19 [shape = 's32[]', space=sflag, size = 0x4, offset = 0, fixed_abs, tag = 'sflag constant byte address 0x0 - dummy sync flag']
  #allocation20 [shape = 's32[]', space=sflag, size = 0x4, offset = 0, fixed_abs, tag = 'sflag constant byte address 0x0 - dummy sync flag']
  #allocation21 [shape = 's32[]', space=sflag, size = 0x4, offset = 0, fixed_abs, tag = 'sflag constant byte address 0x0 - dummy sync flag']
  #allocation22 [shape = 's32[]', space=sflag, size = 0x4, offset = 0, fixed_abs, tag = 'sflag constant byte address 0x0 - dummy sync flag']
  #allocation23 [shape = 's32[]', space=sflag, size = 0x4, offset = 0, fixed_abs, tag = 'sflag constant byte address 0x0 - dummy sync flag']
  #allocation24 [shape = 's32[]', space=sflag, size = 0x4, offset = 0, fixed_abs, tag = 'sflag constant byte address 0x0 - dummy sync flag']
  #allocation25 [shape = 's32[]', space=sflag, size = 0x4, offset = 0, fixed_abs, tag = 'sflag constant byte address 0x0 - dummy sync flag']
  #allocation26 [shape = 's32[]', space=sflag, size = 0x4, offset = 0, fixed_abs, tag = 'sflag constant byte address 0x0 - dummy sync flag']
  #allocation27 [shape = 's32[]', space=sflag, size = 0x4, offset = 0, fixed_abs, tag = 'sflag constant byte address 0x0 - dummy sync flag']
  #allocation28 [shape = 's32[]', space=sflag, size = 0x4, offset = 0, fixed_abs, tag = 'sflag constant byte address 0x0 - dummy sync flag']
  #allocation29 [shape = 's32[]', space=sflag, size = 0x4, offset = 0, fixed_abs, tag = 'sflag constant byte address 0x0 - dummy sync flag']
  %s0 = inlined_call_operand.hbm [shape: s32[2,8], index: 0, kind: input, shape index: {}]
  %s1 = inlined_call_operand.hbm [shape: f32[2,8,8], index: 1, kind: input, shape index: {}]
  %s2 = inlined_call_operand.hbm [shape: f32[8,128], index: 2, kind: input, shape index: {}]
  %s3 = inlined_call_operand.vmem [shape: f32[8,128], index: 3, kind: input, shape index: {}]
  %s4 = inlined_call_operand.hbm [shape: f32[32,128], index: 4, kind: input, shape index: {}]
  %s5 = inlined_call_operand.hbm [shape: f32[2,8,128], index: 5, kind: output, shape index: {}]
  %s6 = sld [smem:[#allocation0]]
  $region85: #{tpu_custom_call.1} parent=0
    _
  %s8 = ssub.s32 1, %s6
  %s9 = scalar_select 0, %s8, %s6
  %11 = dma.hbm_to_smem %s0, 32, [#allocation5], [#allocation4]
  %12 = dma.done [#allocation4], 32
  %13 = sfence
  $region1: #{tpu_custom_call.1} parent=0
    #allocation6 [shape = 'u8[8192]{0}', space=vmem, size = 0x2000, scoped, tag = 'input window, operand 1']
    #allocation7 [shape = 's32[2]{0}', space=sflag, size = 0x8, scoped, tag = 'scoped memory for tpu_custom_call.1']
    #allocation8 [shape = 's32[2]{0}', space=sflag, size = 0x8, scoped, tag = 'scoped memory for tpu_custom_call.1']
    #allocation9 [shape = 'u8[4096]{0}', space=vmem, size = 0x1000, scoped, tag = 'input window, operand 2, single buffered']
    #allocation10 [shape = 's32[1]{0}', space=sflag, size = 0x4, scoped, tag = 'scoped memory for tpu_custom_call.1']
    #allocation11 [shape = 'u8[8192]{0}', space=vmem, size = 0x2000, scoped, tag = 'output window, operand 0']
    %14 = vsyncpa [#allocation7], 0
    %s15 = scalar_lea.sflag [#allocation7], 1
    %16 = vsyncpa %s15, 0
    %17 = vsyncpa [#allocation10], 0
    %18 = vsyncpa [#allocation8], 0
    %s19 = scalar_lea.sflag [#allocation8], 1
    %20 = vsyncpa %s19, 0
    loop: start=0, step=1, limit=4
    $region2: #{tpu_custom_call.1} parent=1 // loop_pre_header
      _
    $region3: #{tpu_custom_call.1} parent=1 // loop_header
      %s22 = sphi 0, %s26
      %p23 = scmp.ge.s32.totalorder %s22, 4
      %s29 = sphi 0, %s41
      %s30 = sphi 0, %s37
      %s31 = sphi 0, %s29
      %s32 = sphi 0, %s30
      %s33 = sphi 0, %s31
      %s34 = sphi 0, %s32
      %s46 = sphi 0, %s48
      %s49 = sphi 0, %s46
      %s50 = sphi 0, %s49
      %s66 = sphi 0, %s50
      %s70 = sphi 0, %s70
      %s72 = sphi 0, %s70
      %s73 = sphi 0, %s72
      %s87 = sphi 0, %s73
      %s93 = sphi 0, %s95
      %s96 = sphi 0, %s93
      %s97 = sphi 0, %s96
      %s113 = sphi 0, %s97
      %s121 = sphi 0, %s123
      %s124 = sphi 0, %s121
      %s125 = sphi 0, %s124
      %s141 = sphi 0, %s125
    $region4: #{tpu_custom_call.1} parent=1 // loop_header_branch
      %25 = sbr.rel (%p23) target = $region8
    $region5: #{tpu_custom_call.1} parent=1 // loop_body
      %s27 = ssub.s32 %s22, 1
      %s28 = ssub.s32 %s22, 2
      %s35 = sadd.s32 1, %s30
      %p36 = scmp.ge.s32.totalorder %s35, 1
      %s37 = scalar_select %p36, 0, %s35
      %s38 = sadd.s32 1, %s29
      %s39 = scalar_select %p36, %s38, %s29
      %p40 = scmp.ge.s32.totalorder %s39, 2
      %s41 = scalar_select %p40, 0, %s39
      %s42 = ssub.s32 %s29, %s41
      %s43 = ssub.s32 %s30, %s37
      %s44 = sor.u32 %s42, %s43
      %p45 = scmp.eq.s32.totalorder %s44, 0
      %s47 = sadd.s32 %s46, 1
      %s48 = scalar_select %p45, %s46, %s47
      %p51 = pneg %p45
      %p52 = scmp.eq.s32.totalorder %s22, 1
      %p53 = por %p51, %p52
      %p54 = scmp.ne.s32.totalorder %s46, %s49
      %p55 = scmp.eq.s32.totalorder %s22, 0
      %p56 = por %p54, %p55
      %p57 = scmp.ne.s32.totalorder %s46, %s49
      %p58 = scmp.eq.s32.totalorder %s27, 1
      %p59 = por %p57, %p58
      %p60 = scmp.ne.s32.totalorder %s49, %s50
      %p61 = scmp.eq.s32.totalorder %s27, 0
      %p62 = por %p60, %p61
      %p63 = scmp.ne.s32.totalorder %s49, %s50
      %p64 = scmp.eq.s32.totalorder %s28, 1
      %p65 = por %p63, %p64
      %p67 = scmp.ne.s32.totalorder %s50, %s66
      %p68 = scmp.eq.s32.totalorder %s28, 0
      %p69 = por %p67, %p68
      %s71 = sadd.s32 %s70, 1
      %p74 = scmp.eq.s32.totalorder %s22, 1
      %p75 = scmp.ne.s32.totalorder %s70, %s72
      %p76 = scmp.eq.s32.totalorder %s22, 0
      %p77 = por %p75, %p76
      %p78 = scmp.ne.s32.totalorder %s70, %s72
      %p79 = scmp.eq.s32.totalorder %s27, 1
      %p80 = por %p78, %p79
      %p81 = scmp.ne.s32.totalorder %s72, %s73
      %p82 = scmp.eq.s32.totalorder %s27, 0
      %p83 = por %p81, %p82
      %p84 = scmp.ne.s32.totalorder %s72, %s73
      %p85 = scmp.eq.s32.totalorder %s28, 1
      %p86 = por %p84, %p85
      %p88 = scmp.ne.s32.totalorder %s73, %s87
      %p89 = scmp.eq.s32.totalorder %s28, 0
      %p90 = por %p88, %p89
      %s91 = ssub.s32 %s30, %s37
      %p92 = scmp.eq.s32.totalorder %s91, 0
      %s94 = sadd.s32 %s93, 1
      %s95 = scalar_select %p92, %s93, %s94
      %p98 = pneg %p92
      %p99 = scmp.eq.s32.totalorder %s22, 1
      %p100 = por %p98, %p99
      %p101 = scmp.ne.s32.totalorder %s93, %s96
      %p102 = scmp.eq.s32.totalorder %s22, 0
      %p103 = por %p101, %p102
      %p104 = scmp.ne.s32.totalorder %s93, %s96
      %p105 = scmp.eq.s32.totalorder %s27, 1
      %p106 = por %p104, %p105
      %p107 = scmp.ne.s32.totalorder %s96, %s97
      %p108 = scmp.eq.s32.totalorder %s27, 0
      %p109 = por %p107, %p108
      %p110 = scmp.ne.s32.totalorder %s96, %s97
      %p111 = scmp.eq.s32.totalorder %s28, 1
      %p112 = por %p110, %p111
      %p114 = scmp.ne.s32.totalorder %s97, %s113
      %p115 = scmp.eq.s32.totalorder %s28, 0
      %p116 = por %p114, %p115
      %s117 = ssub.s32 %s29, %s41
      %s118 = ssub.s32 %s30, %s37
      %s119 = sor.u32 %s117, %s118
      %p120 = scmp.eq.s32.totalorder %s119, 0
      %s122 = sadd.s32 %s121, 1
      %s123 = scalar_select %p120, %s121, %s122
      %p126 = pneg %p120
      %p127 = scmp.eq.s32.totalorder %s22, 1
      %p128 = por %p126, %p127
      %p129 = scmp.ne.s32.totalorder %s121, %s124
      %p130 = scmp.eq.s32.totalorder %s22, 0
      %p131 = por %p129, %p130
      %p132 = scmp.ne.s32.totalorder %s121, %s124
      %p133 = scmp.eq.s32.totalorder %s27, 1
      %p134 = por %p132, %p133
      %p135 = scmp.ne.s32.totalorder %s124, %s125
      %p136 = scmp.eq.s32.totalorder %s27, 0
      %p137 = por %p135, %p136
      %p138 = scmp.ne.s32.totalorder %s124, %s125
      %p139 = scmp.eq.s32.totalorder %s28, 1
      %p140 = por %p138, %p139
      %p142 = scmp.ne.s32.totalorder %s125, %s141
      %p143 = scmp.eq.s32.totalorder %s28, 0
      %p144 = por %p142, %p143
      %p145 = scmp.le.s32.totalorder 1, %s22
      %p146 = scmp.lt.s32.totalorder %s22, 3
      %p147 = pnand %p145, %p146
      %p148 = pneg %p147
      // Predicated region
      $region9: #{tpu_custom_call.1} parent=5 // pred_check
        _
      $region10: #{tpu_custom_call.1} parent=5 // pred_check_branch
        %150 = sbr.rel (%p147) target = $region12
      $region11: #{tpu_custom_call.1} parent=5 // pred_region
        %s151 = ssub.s32 %s22, 1
        // Predicated region
        $region13: #{tpu_custom_call.1} parent=11 // pred_check
          %p152 = pneg %p83
        $region14: #{tpu_custom_call.1} parent=11 // pred_check_branch
          %154 = sbr.rel (%p152) target = $region16
        $region15: #{tpu_custom_call.1} parent=11 // pred_region
          %s156 = ssub.s32 128, 128
          %157 = vsyncadd [#allocation10], %s156
          %s159 = sshll.u32 [#allocation9], 4
          %s160 = int_to_ptr.vmem [resolvable:$true] %s159
          %162 = dma.hbm_to_vmem [thread:$0]  %s2, 128, %s160, [#allocation10]
        $region16: #{tpu_custom_call.1} parent=11 // pred_fallthru
          _
        // Predicated region
        $region17: #{tpu_custom_call.1} parent=11 // pred_check
          %p163 = pneg %p109
        $region18: #{tpu_custom_call.1} parent=11 // pred_check_branch
          %165 = sbr.rel (%p163) target = $region20
        $region19: #{tpu_custom_call.1} parent=11 // pred_region
          %p166 = scmp.lt.s32.totalorder %s32, 0
          %s167 = scalar_select %p166, %s32, 0
          %s168 = smul.addr %s167, 8
          %s169 = scalar_lea.vmem %s3, %s168
        $region20: #{tpu_custom_call.1} parent=11 // pred_fallthru
          _
      $region12: #{tpu_custom_call.1} parent=5 // pred_fallthru
        _
      %p170 = scmp.lt.s32.totalorder %s22, 2
      // Predicated region
      $region21: #{tpu_custom_call.1} parent=5 // pred_check
        %p171 = pneg %p170
      $region22: #{tpu_custom_call.1} parent=5 // pred_check_branch
        %173 = sbr.rel (%p171) target = $region24
      $region23: #{tpu_custom_call.1} parent=5 // pred_region
        // Predicated region
        $region25: #{tpu_custom_call.1} parent=23 // pred_check
          %p174 = pneg %p56
        $region26: #{tpu_custom_call.1} parent=23 // pred_check_branch
          %176 = sbr.rel (%p174) target = $region28
        $region27: #{tpu_custom_call.1} parent=23 // pred_region
          %s177 = sand.u32 %s46, 1
          %s178 = scalar_lea.sflag [#allocation7], %s177
          %s179 = sand.u32 %s46, 1
          %s180 = smul.addr %s179, 8
          %s181 = scalar_lea.vmem [#allocation6], %s180
          %s183 = ssub.s32 128, 128
          %184 = vsyncadd %s178, %s183
          %s185 = sadd.s32 %s30, %s29
          %s186 = smul.addr %s185, 128
          %s187 = scalar_lea.hbm %s1, %s186
          %s189 = sshll.u32 %s181, 4
          %s190 = int_to_ptr.vmem [resolvable:$true] %s189
          %192 = dma.hbm_to_vmem [thread:$0]  %s187, 128, %s190, %s178
        $region28: #{tpu_custom_call.1} parent=23 // pred_fallthru
          _
      $region24: #{tpu_custom_call.1} parent=5 // pred_fallthru
        _
      %p193 = scmp.le.s32.totalorder 1, %s22
      %p194 = scmp.lt.s32.totalorder %s22, 3
      %p195 = pnand %p193, %p194
      %p196 = pneg %p195
      // Predicated region
      $region29: #{tpu_custom_call.1} parent=5 // pred_check
        _
      $region30: #{tpu_custom_call.1} parent=5 // pred_check_branch
        %198 = sbr.rel (%p195) target = $region32
      $region31: #{tpu_custom_call.1} parent=5 // pred_region
        %s199 = ssub.s32 %s22, 1
        %s200 = sand.u32 %s49, 1
        %s201 = scalar_lea.sflag [#allocation7], %s200
        %s202 = sand.u32 %s49, 1
        %s203 = smul.addr %s202, 8
        %s204 = scalar_lea.vmem [#allocation6], %s203
        // Predicated region
        $region33: #{tpu_custom_call.1} parent=31 // pred_check
          %p205 = pneg %p62
        $region34: #{tpu_custom_call.1} parent=31 // pred_check_branch
          %207 = sbr.rel (%p205) target = $region36
        $region35: #{tpu_custom_call.1} parent=31 // pred_region
          %208 = dma.done %s201, 128
        $region36: #{tpu_custom_call.1} parent=31 // pred_fallthru
          _
        // Predicated region
        $region37: #{tpu_custom_call.1} parent=31 // pred_check
          %p209 = pneg %p83
        $region38: #{tpu_custom_call.1} parent=31 // pred_check_branch
          %211 = sbr.rel (%p209) target = $region40
        $region39: #{tpu_custom_call.1} parent=31 // pred_region
          %212 = dma.done [#allocation10], 128
        $region40: #{tpu_custom_call.1} parent=31 // pred_fallthru
          _
        %s213 = sand.u32 %s49, 1
        %s214 = scalar_lea.sflag [#allocation7], %s213
        %s215 = sand.u32 %s49, 1
        %s216 = smul.addr %s215, 8
        %s217 = scalar_lea.vmem [#allocation6], %s216
        %p218 = pneg %p62
        %p219 = pneg %p59
        %p220 = pneg %p83
        %p221 = pneg %p80
        %p222 = scmp.lt.s32.totalorder %s32, 0
        %s223 = scalar_select %p222, %s32, 0
        %s224 = smul.addr %s223, 8
        %s225 = scalar_lea.vmem %s3, %s224
        %p226 = pneg %p109
        %p227 = pneg %p106
        %p228 = pneg %p137
        %p229 = pneg %p134
        %s230 = sand.u32 %s124, 1
        %s231 = scalar_lea.sflag [#allocation8], %s230
        %s232 = sand.u32 %s124, 1
        %s233 = smul.addr %s232, 8
        %s234 = scalar_lea.vmem [#allocation11], %s233
        %p235 = scmp.lt.s32.totalorder %s32, 0
        %s236 = scalar_select %p235, %s32, 0
        %s237 = smul.addr %s236, 8
        %s238 = scalar_lea.vmem %s3, %s237
        %s239 = smul.u32 %s32, 8
        %s240 = sshra.s32 %s239, 7
        %s241 = sand.u32 %s239, 127
        %s242 = sadd.s32 %s240, %s31
        %s243 = smul.u32 %s242, 128
        %s244 = sshra.s32 %s239, 7
        %s245 = sand.u32 %s239, 127
        %s246 = sadd.s32 %s243, %s245
        %s247 = sld [smem:[#allocation5 + %s246]]
        %s248 = sadd.s32 %s239, 1
        %s249 = sshra.s32 %s248, 7
        %s250 = sand.u32 %s248, 127
        %s251 = sadd.s32 %s249, %s31
        %s252 = smul.u32 %s251, 128
        %s253 = sshra.s32 %s248, 7
        %s254 = sand.u32 %s248, 127
        %s255 = sadd.s32 %s252, %s254
        %s256 = sld [smem:[#allocation5 + %s255]]
        %s257 = sadd.s32 %s239, 2
        %s258 = sshra.s32 %s257, 7
        %s259 = sand.u32 %s257, 127
        %s260 = sadd.s32 %s258, %s31
        %s261 = smul.u32 %s260, 128
        %s262 = sshra.s32 %s257, 7
        %s263 = sand.u32 %s257, 127
        %s264 = sadd.s32 %s261, %s263
        %s265 = sld [smem:[#allocation5 + %s264]]
        %s266 = sadd.s32 %s239, 3
        %s267 = sshra.s32 %s266, 7
        %s268 = sand.u32 %s266, 127
        %s269 = sadd.s32 %s267, %s31
        %s270 = smul.u32 %s269, 128
        %s271 = sshra.s32 %s266, 7
        %s272 = sand.u32 %s266, 127
        %s273 = sadd.s32 %s270, %s272
        %s274 = sld [smem:[#allocation5 + %s273]]
        %s275 = sadd.s32 %s239, 4
        %s276 = sshra.s32 %s275, 7
        %s277 = sand.u32 %s275, 127
        %s278 = sadd.s32 %s276, %s31
        %s279 = smul.u32 %s278, 128
        %s280 = sshra.s32 %s275, 7
        %s281 = sand.u32 %s275, 127
        %s282 = sadd.s32 %s279, %s281
        %s283 = sld [smem:[#allocation5 + %s282]]
        %s284 = sadd.s32 %s239, 5
        %s285 = sshra.s32 %s284, 7
        %s286 = sand.u32 %s284, 127
        %s287 = sadd.s32 %s285, %s31
        %s288 = smul.u32 %s287, 128
        %s289 = sshra.s32 %s284, 7
        %s290 = sand.u32 %s284, 127
        %s291 = sadd.s32 %s288, %s290
        %s292 = sld [smem:[#allocation5 + %s291]]
        %s293 = sadd.s32 %s239, 6
        %s294 = sshra.s32 %s293, 7
        %s295 = sand.u32 %s293, 127
        %s296 = sadd.s32 %s294, %s31
        %s297 = smul.u32 %s296, 128
        %s298 = sshra.s32 %s293, 7
        %s299 = sand.u32 %s293, 127
        %s300 = sadd.s32 %s297, %s299
        %s301 = sld [smem:[#allocation5 + %s300]]
        %s302 = sadd.s32 %s239, 7
        %s303 = sshra.s32 %s302, 7
        %s304 = sand.u32 %s302, 127
        %s305 = sadd.s32 %s303, %s31
        %s306 = smul.u32 %s305, 128
        %s307 = sshra.s32 %s302, 7
        %s308 = sand.u32 %s302, 127
        %s309 = sadd.s32 %s306, %s308
        %s310 = sld [smem:[#allocation5 + %s309]]
        %s311 = smul.addr %s247, 16
        %s312 = scalar_lea.hbm %s4, %s311
        // Predicated region
        $region41: #{tpu_custom_call.1} parent=31 // pred_check
          _
        $region42: #{tpu_custom_call.1} parent=31 // pred_check_branch
          %314 = sbr.rel target = $region44
        $region43: #{tpu_custom_call.1} parent=31 // pred_region
          %315 = sst [smem:[#allocation14]] [#allocation13]
          %316 = sst [smem:[#allocation15]] [#allocation12]
        $region44: #{tpu_custom_call.1} parent=31 // pred_fallthru
          _
        %318 = shalt.err (0)
        %s320 = sshll.u32 [#allocation2], 4
        %s321 = int_to_ptr.vmem [resolvable:$true] %s320
        %323 = dma.hbm_to_vmem [thread:$0]  %s312, 16, %s321, [#allocation3]
        %s324 = smul.addr %s256, 16
        %s325 = scalar_lea.hbm %s4, %s324
        %s326 = scalar_lea.vmem [#allocation2], 1
        // Predicated region
        $region45: #{tpu_custom_call.1} parent=31 // pred_check
          _
        $region46: #{tpu_custom_call.1} parent=31 // pred_check_branch
          %328 = sbr.rel target = $region48
        $region47: #{tpu_custom_call.1} parent=31 // pred_region
          %329 = sst [smem:[#allocation14]] [#allocation17]
          %330 = sst [smem:[#allocation15]] [#allocation16]
        $region48: #{tpu_custom_call.1} parent=31 // pred_fallthru
          _
        %332 = shalt.err (0)
        %s334 = sshll.u32 %s326, 4
        %s335 = int_to_ptr.vmem [resolvable:$true] %s334
        %337 = dma.hbm_to_vmem [thread:$0]  %s325, 16, %s335, [#allocation3]
        %s338 = smul.addr %s265, 16
        %s339 = scalar_lea.hbm %s4, %s338
        %s340 = scalar_lea.vmem [#allocation2], 2
        // Predicated region
        $region49: #{tpu_custom_call.1} parent=31 // pred_check
          _
        $region50: #{tpu_custom_call.1} parent=31 // pred_check_branch
          %342 = sbr.rel target = $region52
        $region51: #{tpu_custom_call.1} parent=31 // pred_region
          %343 = sst [smem:[#allocation14]] [#allocation19]
          %344 = sst [smem:[#allocation15]] [#allocation18]
        $region52: #{tpu_custom_call.1} parent=31 // pred_fallthru
          _
        %346 = shalt.err (0)
        %s348 = sshll.u32 %s340, 4
        %s349 = int_to_ptr.vmem [resolvable:$true] %s348
        %351 = dma.hbm_to_vmem [thread:$0]  %s339, 16, %s349, [#allocation3]
        %s352 = smul.addr %s274, 16
        %s353 = scalar_lea.hbm %s4, %s352
        %s354 = scalar_lea.vmem [#allocation2], 3
        // Predicated region
        $region53: #{tpu_custom_call.1} parent=31 // pred_check
          _
        $region54: #{tpu_custom_call.1} parent=31 // pred_check_branch
          %356 = sbr.rel target = $region56
        $region55: #{tpu_custom_call.1} parent=31 // pred_region
          %357 = sst [smem:[#allocation14]] [#allocation21]
          %358 = sst [smem:[#allocation15]] [#allocation20]
        $region56: #{tpu_custom_call.1} parent=31 // pred_fallthru
          _
        %360 = shalt.err (0)
        %s362 = sshll.u32 %s354, 4
        %s363 = int_to_ptr.vmem [resolvable:$true] %s362
        %365 = dma.hbm_to_vmem [thread:$0]  %s353, 16, %s363, [#allocation3]
        %s366 = smul.addr %s283, 16
        %s367 = scalar_lea.hbm %s4, %s366
        %s368 = scalar_lea.vmem [#allocation2], 4
        // Predicated region
        $region57: #{tpu_custom_call.1} parent=31 // pred_check
          _
        $region58: #{tpu_custom_call.1} parent=31 // pred_check_branch
          %370 = sbr.rel target = $region60
        $region59: #{tpu_custom_call.1} parent=31 // pred_region
          %371 = sst [smem:[#allocation14]] [#allocation23]
          %372 = sst [smem:[#allocation15]] [#allocation22]
        $region60: #{tpu_custom_call.1} parent=31 // pred_fallthru
          _
        %374 = shalt.err (0)
        %s376 = sshll.u32 %s368, 4
        %s377 = int_to_ptr.vmem [resolvable:$true] %s376
        %379 = dma.hbm_to_vmem [thread:$0]  %s367, 16, %s377, [#allocation3]
        %s380 = smul.addr %s292, 16
        %s381 = scalar_lea.hbm %s4, %s380
        %s382 = scalar_lea.vmem [#allocation2], 5
        // Predicated region
        $region61: #{tpu_custom_call.1} parent=31 // pred_check
          _
        $region62: #{tpu_custom_call.1} parent=31 // pred_check_branch
          %384 = sbr.rel target = $region64
        $region63: #{tpu_custom_call.1} parent=31 // pred_region
          %385 = sst [smem:[#allocation14]] [#allocation25]
          %386 = sst [smem:[#allocation15]] [#allocation24]
        $region64: #{tpu_custom_call.1} parent=31 // pred_fallthru
          _
        %388 = shalt.err (0)
        %s390 = sshll.u32 %s382, 4
        %s391 = int_to_ptr.vmem [resolvable:$true] %s390
        %393 = dma.hbm_to_vmem [thread:$0]  %s381, 16, %s391, [#allocation3]
        %s394 = smul.addr %s301, 16
        %s395 = scalar_lea.hbm %s4, %s394
        %s396 = scalar_lea.vmem [#allocation2], 6
        // Predicated region
        $region65: #{tpu_custom_call.1} parent=31 // pred_check
          _
        $region66: #{tpu_custom_call.1} parent=31 // pred_check_branch
          %398 = sbr.rel target = $region68
        $region67: #{tpu_custom_call.1} parent=31 // pred_region
          %399 = sst [smem:[#allocation14]] [#allocation27]
          %400 = sst [smem:[#allocation15]] [#allocation26]
        $region68: #{tpu_custom_call.1} parent=31 // pred_fallthru
          _
        %402 = shalt.err (0)
        %s404 = sshll.u32 %s396, 4
        %s405 = int_to_ptr.vmem [resolvable:$true] %s404
        %407 = dma.hbm_to_vmem [thread:$0]  %s395, 16, %s405, [#allocation3]
        %s408 = smul.addr %s310, 16
        %s409 = scalar_lea.hbm %s4, %s408
        %s410 = scalar_lea.vmem [#allocation2], 7
        // Predicated region
        $region69: #{tpu_custom_call.1} parent=31 // pred_check
          _
        $region70: #{tpu_custom_call.1} parent=31 // pred_check_branch
          %412 = sbr.rel target = $region72
        $region71: #{tpu_custom_call.1} parent=31 // pred_region
          %413 = sst [smem:[#allocation14]] [#allocation29]
          %414 = sst [smem:[#allocation15]] [#allocation28]
        $region72: #{tpu_custom_call.1} parent=31 // pred_fallthru
          _
        %416 = shalt.err (0)
        %s418 = sshll.u32 %s410, 4
        %s419 = int_to_ptr.vmem [resolvable:$true] %s418
        %421 = dma.hbm_to_vmem [thread:$0]  %s409, 16, %s419, [#allocation3]
        %s422 = smul.u32 8, 1
        %s423 = sshll.u32 %s422, 4
        %424 = dma.done [#allocation3], %s423
        %v425 = vld [vmem:[%s204] sm:$0xff]
        %v426 = vld [vmem:[#allocation9] sm:$0xff]
        %vm427 = vcmask 64512
        %v429 = vsel %vm427, %v425, 0
        %431 = vmatprep.subr.mxu0 0.0
        %432 = vmatpush1.msra.mxu0 %v426
        %433 = vmatprep.subr.mxu0 0.0
        %434 = vmatpush1.msra.mxu0 0.0
        %435 = vmatprep.subr.mxu0 0.0
        %436 = vmatpush1.msra.mxu0 0.0
        %437 = vmatprep.subr.mxu0 0.0
        %438 = vmatpush1.msra.mxu0 0.0
        %439 = vmatprep.subr.mxu0 0.0
        %440 = vmatpush1.msra.mxu0 0.0
        %441 = vmatprep.subr.mxu0 0.0
        %442 = vmatpush1.msra.mxu0 0.0
        %443 = vmatprep.subr.mxu0 0.0
        %444 = vmatpush1.msra.mxu0 0.0
        %445 = vmatprep.subr.mxu0 0.0
        %446 = vmatpush1.msra.mxu0 0.0
        %447 = vmatprep.subr.mxu0 0.0
        %448 = vmatpush1.msra.mxu0 0.0
        %449 = vmatprep.subr.mxu0 0.0
        %450 = vmatpush1.msra.mxu0 0.0
        %451 = vmatprep.subr.mxu0 0.0
        %452 = vmatpush1.msra.mxu0 0.0
        %453 = vmatprep.subr.mxu0 0.0
        %454 = vmatpush1.msra.mxu0 0.0
        %455 = vmatprep.subr.mxu0 0.0
        %456 = vmatpush1.msra.mxu0 0.0
        %457 = vmatprep.subr.mxu0 0.0
        %458 = vmatpush1.msra.mxu0 0.0
        %459 = vmatprep.subr.mxu0 0.0
        %460 = vmatpush1.msra.mxu0 0.0
        %461 = vmatprep.subr.mxu0 0.0
        %462 = vmatpush1.msra.mxu0 0.0
        %463 = vmatprep.subr.mxu0 0.0
        %464 = vmatpush1.msra.mxu0 0.0
        %465 = vmatprep.subr.mxu0 0.0
        %466 = vmatpush1.msra.mxu0 0.0
        %467 = vmatprep.subr.mxu0 0.0
        %468 = vmatpush1.msra.mxu0 0.0
        %469 = vmatprep.subr.mxu0 0.0
        %470 = vmatpush1.msra.mxu0 0.0
        %471 = vmatprep.subr.mxu0 0.0
        %472 = vmatpush1.msra.mxu0 0.0
        %473 = vmatprep.subr.mxu0 0.0
        %474 = vmatpush1.msra.mxu0 0.0
        %475 = vmatprep.subr.mxu0 0.0
        %476 = vmatpush1.msra.mxu0 0.0
        %477 = vmatprep.subr.mxu0 0.0
        %478 = vmatpush1.msra.mxu0 0.0
        %479 = vmatprep.subr.mxu0 0.0
        %480 = vmatpush1.msra.mxu0 0.0
        %481 = vmatprep.subr.mxu0 0.0
        %482 = vmatpush1.msra.mxu0 0.0
        %483 = vmatprep.subr.mxu0 0.0
        %484 = vmatpush1.msra.mxu0 0.0
        %485 = vmatprep.subr.mxu0 0.0
        %486 = vmatpush1.msra.mxu0 0.0
        %487 = vmatprep.subr.mxu0 0.0
        %488 = vmatpush1.msra.mxu0 0.0
        %489 = vmatprep.subr.mxu0 0.0
        %490 = vmatpush1.msra.mxu0 0.0
        %491 = vmatprep.subr.mxu0 0.0
        %492 = vmatpush1.msra.mxu0 0.0
        %493 = vmatprep.subr.mxu0 0.0
        %494 = vmatpush1.msra.mxu0 0.0
        %495 = vmatprep.mubr.f32.mxu0 0.0
        %496 = vmatmul.mubr.f32.gmra.mrb[0].mxu0 %v429
        %v497 = vpop.f32.mrb[0].mxu0
        %v498 = vadd.f32 0.0, %v497
        %v499 = vpop.f32.mrb[0].mxu0
        %500 = vdwg.mxu0
        %v501 = vld [vmem:[#allocation2] sm:$0xff]
        %v502 = vld [vmem:[%s238] sm:$0xff]
        %v503 = vadd.f32 %v501, %v502
        %v504 = vadd.f32 %v503, %v498
        %505 = vst [vmem:[%s234] sm:$0xff] %v504
        %s506 = sand.u32 %s124, 1
        %s507 = scalar_lea.sflag [#allocation8], %s506
        %s508 = sand.u32 %s124, 1
        %s509 = smul.addr %s508, 8
        %s510 = scalar_lea.vmem [#allocation11], %s509
        // Predicated region
        $region73: #{tpu_custom_call.1} parent=31 // pred_check
          %p511 = pneg %p134
        $region74: #{tpu_custom_call.1} parent=31 // pred_check_branch
          %513 = sbr.rel (%p511) target = $region76
        $region75: #{tpu_custom_call.1} parent=31 // pred_region
          %s515 = ssub.s32 128, 128
          %516 = vsyncadd %s507, %s515
          %s517 = sadd.s32 %s32, %s31
          %s518 = smul.addr %s517, 128
          %s519 = scalar_lea.hbm %s5, %s518
          %s521 = sshll.u32 %s510, 4
          %s522 = int_to_ptr.vmem [resolvable:$true] %s521
          %524 = dma.vmem_to_hbm [thread:$0]  %s522, 128, %s519, %s507
        $region76: #{tpu_custom_call.1} parent=31 // pred_fallthru
          _
      $region32: #{tpu_custom_call.1} parent=5 // pred_fallthru
        _
      %p525 = scmp.le.s32.totalorder 2, %s22
      // Predicated region
      $region77: #{tpu_custom_call.1} parent=5 // pred_check
        %p526 = pneg %p525
      $region78: #{tpu_custom_call.1} parent=5 // pred_check_branch
        %528 = sbr.rel (%p526) target = $region80
      $region79: #{tpu_custom_call.1} parent=5 // pred_region
        %s529 = ssub.s32 %s22, 2
        // Predicated region
        $region81: #{tpu_custom_call.1} parent=79 // pred_check
          %p530 = pneg %p140
        $region82: #{tpu_custom_call.1} parent=79 // pred_check_branch
          %532 = sbr.rel (%p530) target = $region84
        $region83: #{tpu_custom_call.1} parent=79 // pred_region
          %s533 = sand.u32 %s125, 1
          %s534 = scalar_lea.sflag [#allocation8], %s533
          %s535 = sand.u32 %s125, 1
          %s536 = smul.addr %s535, 8
          %s537 = scalar_lea.vmem [#allocation11], %s536
          %538 = dma.done %s534, 128
        $region84: #{tpu_custom_call.1} parent=79 // pred_fallthru
          _
      $region80: #{tpu_custom_call.1} parent=5 // pred_fallthru
        _
    $region6: #{tpu_custom_call.1} parent=1 // loop_footer
      %s26 = sadd.s32 1, %s22
    $region7: #{tpu_custom_call.1} parent=1 // loop_footer_branch
      %21 = sbr.rel target = $region3
    $region8: #{tpu_custom_call.1} parent=1 // loop_exit
      _
    %539 = vsyncpa [#allocation7], 1
    %s540 = scalar_lea.sflag [#allocation7], 1
    %541 = vsyncpa %s540, 1
    %542 = vsyncpa [#allocation10], 1
    %543 = vsyncpa [#allocation8], 1
    %s544 = scalar_lea.sflag [#allocation8], 1
    %545 = vsyncpa %s544, 1
  %546 = vsyncmov [#allocation3]
  %s547 = vpop.sfrf %546
  %p548 = scmp.eq.s32.totalorder %s547, 0
  %p549 = pneg %p548
  %551 = shalt.err (%p549)
  %s552 = scalar_lea.sflag [#allocation3], 1
  %553 = vsyncmov %s552
  %s554 = vpop.sfrf %553
  %p555 = scmp.eq.s32.totalorder %s554, 0
  %p556 = pneg %p555
  %558 = shalt.err (%p556)

</llo_original>
